<compile_context>
chip_gen: v6e
topology: v6e:2x2x1
jax: 0.10.0
libtpu: 0.0.40
codegen_flags: <defaults>
</compile_context>

<pallas_src>
import jax
import jax.numpy as jnp
import numpy as np
from jax.experimental import pallas as pl
from jax.experimental.pallas import tpu as pltpu  # noqa: F401  (TPU backend)

# Row offsets of each weight matrix inside the packed (40, 16) slab.
ROW_MU1, ROW_MU2 = 0, 2      # (2, 8), (8, 2)
ROW_LV1, ROW_LV2 = 10, 12    # (2, 8), (8, 2)
ROW_G1, ROW_G2 = 20, 24      # (4, 16), (16, 2)
N_ROWS, N_COLS = 40, 16


def spsnet_kernel(feat_ref, gt_ref, eps_ref, w_ref, loss_ref, logvar_ref):
    x = feat_ref[...]          # (N, 2)
    gt = gt_ref[...]           # (N, 2)
    eps = eps_ref[...]         # (N, 2)

    def linear(h, row0, k_in, n_out):
        # y = h @ W with W = slab[row0:row0+k_in, :n_out], unrolled on the VPU:
        #   y = sum_k h[:, k:k+1] * W[k:k+1, :]
        acc = h[:, 0:1] * w_ref[row0:row0 + 1, 0:n_out]
        for k in range(1, k_in):
            acc = acc + h[:, k:k + 1] * w_ref[row0 + k:row0 + k + 1, 0:n_out]
        return acc

    # ---- get_mu: Linear(2->8, no bias) -> ReLU -> Linear(8->2, no bias)
    h_mu = jnp.maximum(linear(x, ROW_MU1, 2, 8), 0.0)
    mu = linear(h_mu, ROW_MU2, 8, 2)

    # ---- get_logvar: same structure
    h_lv = jnp.maximum(linear(x, ROW_LV1, 2, 8), 0.0)
    logvar = linear(h_lv, ROW_LV2, 8, 2)
    logvar_ref[...] = logvar

    # ---- reparametrize: z = eps * exp(0.5*logvar) + mu
    std = jnp.exp(0.5 * logvar)
    z = eps * std + mu

    # ---- gene(cat([features, z], -1)): Linear(4->16) -> ReLU -> Linear(16->2)
    # cat + matmul as split matmul: [x | z] @ W1 = x @ W1[:2] + z @ W1[2:]
    h_g = linear(x, ROW_G1, 2, 16) + linear(z, ROW_G1 + 2, 2, 16)
    h_g = jnp.maximum(h_g, 0.0)
    center_pred = linear(h_g, ROW_G2, 16, 2)           # (N, 2)

    # ---- loss_reg = mean(smooth_l1_loss(center_pred, gt))   (beta=1, mean)
    diff = center_pred - gt
    ad = jnp.abs(diff)
    per_elem = jnp.where(ad < 1.0, 0.5 * diff * diff, ad - 0.5)
    loss_reg = jnp.mean(per_elem)

    # ---- KL( N(mu, sigma) || N(0,1) ), Independent over last dim, then mean.
    # sigma = exp(logvar) + 3e-22 ~= std*std ; log(sigma) ~= logvar
    sigma = std * std
    kl_elem = 0.5 * (sigma * sigma + mu * mu - 1.0) - logvar
    kl_loss = jnp.mean(jnp.sum(kl_elem, axis=-1, keepdims=True))

    # ---- L2 regularisation: one pass over the packed slab.
    # Zero padding contributes nothing to the per-segment sums of squares.
    w = w_ref[...]
    row_sq = jnp.sum(w * w, axis=1, keepdims=True)      # (40, 1)

    def seg_norm(a, b):
        return jnp.sqrt(jnp.sum(row_sq[a:b]))

    l2 = (seg_norm(ROW_MU1, ROW_MU1 + 2) + seg_norm(ROW_MU2, ROW_MU2 + 8) +
          seg_norm(ROW_LV1, ROW_LV1 + 2) + seg_norm(ROW_LV2, ROW_LV2 + 8) +
          seg_norm(ROW_G1, ROW_G1 + 4) + seg_norm(ROW_G2, ROW_G2 + 16))

    total = loss_reg + kl_loss * 5e-05 + l2 * 5e-05
    # (1,1) VMEM scalar output: tiny and guaranteed to lower. An SMEM scalar
    # output would save one masked vst but risks a vector->scalar lowering gap.
    loss_ref[...] = jnp.reshape(total, (1, 1))


def pack_weights(params):
    """Pack all six weight matrices into one zero-padded (40, 16) f32 slab."""
    (w_mu1, w_mu2, w_lv1, w_lv2, w_g1, w_g2) = params
    slab = jnp.zeros((N_ROWS, N_COLS), jnp.float32)
    slab = slab.at[ROW_MU1:ROW_MU1 + 2, 0:8].set(w_mu1)
    slab = slab.at[ROW_MU2:ROW_MU2 + 8, 0:2].set(w_mu2)
    slab = slab.at[ROW_LV1:ROW_LV1 + 2, 0:8].set(w_lv1)
    slab = slab.at[ROW_LV2:ROW_LV2 + 8, 0:2].set(w_lv2)
    slab = slab.at[ROW_G1:ROW_G1 + 4, 0:16].set(w_g1)
    slab = slab.at[ROW_G2:ROW_G2 + 16, 0:2].set(w_g2)
    return slab


def spsnet_forward(features, gt, eps, params):
    n = features.shape[0]
    slab = pack_weights(params)
    # No grid / no BlockSpecs: single invocation, every operand is one
    # full-array VMEM block (all KB-scale, far under VMEM limits).
    loss, logvar = pl.pallas_call(
        spsnet_kernel,
        out_shape=(
            jax.ShapeDtypeStruct((1, 1), jnp.float32),
            jax.ShapeDtypeStruct((n, 2), jnp.float32),
        ),
    )(features, gt, eps, slab)
    return loss[0, 0], logvar


def spsnet_ref(features, gt, eps, params):
    """Pure-JAX reference (mirrors the PyTorch module exactly)."""
    (w_mu1, w_mu2, w_lv1, w_lv2, w_g1, w_g2) = params
    mu = jnp.maximum(features @ w_mu1, 0.0) @ w_mu2
    logvar = jnp.maximum(features @ w_lv1, 0.0) @ w_lv2
    std = jnp.exp(0.5 * logvar)
    z = eps * std + mu
    gene_in = jnp.concatenate([features, z], axis=-1)
    center_pred = jnp.maximum(gene_in @ w_g1, 0.0) @ w_g2
    diff = center_pred - gt
    ad = jnp.abs(diff)
    loss_reg = jnp.mean(jnp.where(ad < 1.0, 0.5 * diff * diff, ad - 0.5))
    sigma = jnp.exp(logvar) + 3e-22
    kl = jnp.mean(jnp.sum(0.5 * (sigma ** 2 + mu ** 2 - 1.0) - jnp.log(sigma),
                          axis=-1))
    l2 = sum(jnp.sqrt(jnp.sum(w ** 2))
             for w in (w_mu1, w_mu2, w_lv1, w_lv2, w_g1, w_g2))
    return loss_reg + kl * 5e-05 + l2 * 5e-05, logvar


if __name__ == "__main__":
    key = jax.random.PRNGKey(0)
    ks = jax.random.split(key, 9)

    N = 8  # batch of (x, y) feature points
    features = jax.random.normal(ks[0], (N, 2), jnp.float32)
    gt = jax.random.normal(ks[1], (N, 2), jnp.float32)
    # eps is the standard-normal noise used by reparametrize (host-generated
    # so the kernel is deterministic given inputs).
    eps = jax.random.normal(ks[2], (N, 2), jnp.float32)

    # Deterministic synthetic weights, stored as (in_features, out_features).
    w_mu1 = 0.3 * jax.random.normal(ks[3], (2, 8), jnp.float32)
    w_mu2 = 0.3 * jax.random.normal(ks[4], (8, 2), jnp.float32)
    w_lv1 = 0.3 * jax.random.normal(ks[5], (2, 8), jnp.float32)
    w_lv2 = 0.3 * jax.random.normal(ks[6], (8, 2), jnp.float32)
    w_g1 = 0.3 * jax.random.normal(ks[7], (4, 16), jnp.float32)
    w_g2 = 0.3 * jax.random.normal(ks[8], (16, 2), jnp.float32)
    params = (w_mu1, w_mu2, w_lv1, w_lv2, w_g1, w_g2)

    loss, logvar = spsnet_forward(features, gt, eps, params)
    jax.block_until_ready((loss, logvar))

    loss_ref, logvar_ref = spsnet_ref(features, gt, eps, params)
    np.testing.assert_allclose(np.asarray(loss), np.asarray(loss_ref),
                               rtol=1e-5, atol=1e-6)
    np.testing.assert_allclose(np.asarray(logvar), np.asarray(logvar_ref),
                               rtol=1e-5, atol=1e-6)

    print("KERNEL_OK")
</pallas_src>

<mosaic_0001>
module attributes {stable_mosaic.version = 11 : i64} {
  func.func @spsnet_kernel(%arg0: memref<8x2xf32, #tpu.memory_space<vmem>>, %arg1: memref<8x2xf32, #tpu.memory_space<vmem>>, %arg2: memref<8x2xf32, #tpu.memory_space<vmem>>, %arg3: memref<40x16xf32, #tpu.memory_space<vmem>>, %arg4: memref<1x1xf32, #tpu.memory_space<vmem>>, %arg5: memref<8x2xf32, #tpu.memory_space<vmem>>) attributes {dimension_semantics = [], scalar_prefetch = 0 : i64, scratch_operands = 0 : i64, tpu.core_type = #tpu.core_type<tc>} {
    %c0 = arith.constant 0 : index
    %c0_0 = arith.constant 0 : index
    %0 = vector.load %arg0[%c0, %c0_0] : memref<8x2xf32, #tpu.memory_space<vmem>>, vector<8x2xf32>
    %c0_1 = arith.constant 0 : index
    %c0_2 = arith.constant 0 : index
    %1 = vector.load %arg1[%c0_1, %c0_2] : memref<8x2xf32, #tpu.memory_space<vmem>>, vector<8x2xf32>
    %c0_3 = arith.constant 0 : index
    %c0_4 = arith.constant 0 : index
    %2 = vector.load %arg2[%c0_3, %c0_4] : memref<8x2xf32, #tpu.memory_space<vmem>>, vector<8x2xf32>
    %3 = vector.extract_strided_slice %0 {offsets = [0, 0], sizes = [8, 1], strides = [1, 1]} : vector<8x2xf32> to vector<8x1xf32>
    %c0_5 = arith.constant 0 : index
    %c0_6 = arith.constant 0 : index
    %4 = vector.load %arg3[%c0_5, %c0_6] : memref<40x16xf32, #tpu.memory_space<vmem>>, vector<1x8xf32>
    %5 = vector.broadcast %3 : vector<8x1xf32> to vector<8x8xf32>
    %6 = vector.broadcast %4 : vector<1x8xf32> to vector<8x8xf32>
    %7 = arith.mulf %5, %6 : vector<8x8xf32>
    %8 = vector.extract_strided_slice %0 {offsets = [0, 1], sizes = [8, 1], strides = [1, 1]} : vector<8x2xf32> to vector<8x1xf32>
    %c1 = arith.constant 1 : index
    %c0_7 = arith.constant 0 : index
    %9 = vector.load %arg3[%c1, %c0_7] : memref<40x16xf32, #tpu.memory_space<vmem>>, vector<1x8xf32>
    %10 = vector.broadcast %8 : vector<8x1xf32> to vector<8x8xf32>
    %11 = vector.broadcast %9 : vector<1x8xf32> to vector<8x8xf32>
    %12 = arith.mulf %10, %11 : vector<8x8xf32>
    %13 = arith.addf %7, %12 : vector<8x8xf32>
    %cst = arith.constant 0.000000e+00 : f32
    %14 = vector.broadcast %cst : f32 to vector<8x8xf32>
    %15 = arith.maximumf %13, %14 : vector<8x8xf32>
    %16 = vector.extract_strided_slice %15 {offsets = [0, 0], sizes = [8, 1], strides = [1, 1]} : vector<8x8xf32> to vector<8x1xf32>
    %c2 = arith.constant 2 : index
    %c0_8 = arith.constant 0 : index
    %17 = vector.load %arg3[%c2, %c0_8] : memref<40x16xf32, #tpu.memory_space<vmem>>, vector<1x2xf32>
    %18 = vector.broadcast %16 : vector<8x1xf32> to vector<8x2xf32>
    %19 = vector.broadcast %17 : vector<1x2xf32> to vector<8x2xf32>
    %20 = arith.mulf %18, %19 : vector<8x2xf32>
    %21 = vector.extract_strided_slice %15 {offsets = [0, 1], sizes = [8, 1], strides = [1, 1]} : vector<8x8xf32> to vector<8x1xf32>
    %c3 = arith.constant 3 : index
    %c0_9 = arith.constant 0 : index
    %22 = vector.load %arg3[%c3, %c0_9] : memref<40x16xf32, #tpu.memory_space<vmem>>, vector<1x2xf32>
    %23 = vector.broadcast %21 : vector<8x1xf32> to vector<8x2xf32>
    %24 = vector.broadcast %22 : vector<1x2xf32> to vector<8x2xf32>
    %25 = arith.mulf %23, %24 : vector<8x2xf32>
    %26 = arith.addf %20, %25 : vector<8x2xf32>
    %27 = vector.extract_strided_slice %15 {offsets = [0, 2], sizes = [8, 1], strides = [1, 1]} : vector<8x8xf32> to vector<8x1xf32>
    %c4 = arith.constant 4 : index
    %c0_10 = arith.constant 0 : index
    %28 = vector.load %arg3[%c4, %c0_10] : memref<40x16xf32, #tpu.memory_space<vmem>>, vector<1x2xf32>
    %29 = vector.broadcast %27 : vector<8x1xf32> to vector<8x2xf32>
    %30 = vector.broadcast %28 : vector<1x2xf32> to vector<8x2xf32>
    %31 = arith.mulf %29, %30 : vector<8x2xf32>
    %32 = arith.addf %26, %31 : vector<8x2xf32>
    %33 = vector.extract_strided_slice %15 {offsets = [0, 3], sizes = [8, 1], strides = [1, 1]} : vector<8x8xf32> to vector<8x1xf32>
    %c5 = arith.constant 5 : index
    %c0_11 = arith.constant 0 : index
    %34 = vector.load %arg3[%c5, %c0_11] : memref<40x16xf32, #tpu.memory_space<vmem>>, vector<1x2xf32>
    %35 = vector.broadcast %33 : vector<8x1xf32> to vector<8x2xf32>
    %36 = vector.broadcast %34 : vector<1x2xf32> to vector<8x2xf32>
    %37 = arith.mulf %35, %36 : vector<8x2xf32>
    %38 = arith.addf %32, %37 : vector<8x2xf32>
    %39 = vector.extract_strided_slice %15 {offsets = [0, 4], sizes = [8, 1], strides = [1, 1]} : vector<8x8xf32> to vector<8x1xf32>
    %c6 = arith.constant 6 : index
    %c0_12 = arith.constant 0 : index
    %40 = vector.load %arg3[%c6, %c0_12] : memref<40x16xf32, #tpu.memory_space<vmem>>, vector<1x2xf32>
    %41 = vector.broadcast %39 : vector<8x1xf32> to vector<8x2xf32>
    %42 = vector.broadcast %40 : vector<1x2xf32> to vector<8x2xf32>
    %43 = arith.mulf %41, %42 : vector<8x2xf32>
    %44 = arith.addf %38, %43 : vector<8x2xf32>
    %45 = vector.extract_strided_slice %15 {offsets = [0, 5], sizes = [8, 1], strides = [1, 1]} : vector<8x8xf32> to vector<8x1xf32>
    %c7 = arith.constant 7 : index
    %c0_13 = arith.constant 0 : index
    %46 = vector.load %arg3[%c7, %c0_13] : memref<40x16xf32, #tpu.memory_space<vmem>>, vector<1x2xf32>
    %47 = vector.broadcast %45 : vector<8x1xf32> to vector<8x2xf32>
    %48 = vector.broadcast %46 : vector<1x2xf32> to vector<8x2xf32>
    %49 = arith.mulf %47, %48 : vector<8x2xf32>
    %50 = arith.addf %44, %49 : vector<8x2xf32>
    %51 = vector.extract_strided_slice %15 {offsets = [0, 6], sizes = [8, 1], strides = [1, 1]} : vector<8x8xf32> to vector<8x1xf32>
    %c8 = arith.constant 8 : index
    %c0_14 = arith.constant 0 : index
    %52 = vector.load %arg3[%c8, %c0_14] : memref<40x16xf32, #tpu.memory_space<vmem>>, vector<1x2xf32>
    %53 = vector.broadcast %51 : vector<8x1xf32> to vector<8x2xf32>
    %54 = vector.broadcast %52 : vector<1x2xf32> to vector<8x2xf32>
    %55 = arith.mulf %53, %54 : vector<8x2xf32>
    %56 = arith.addf %50, %55 : vector<8x2xf32>
    %57 = vector.extract_strided_slice %15 {offsets = [0, 7], sizes = [8, 1], strides = [1, 1]} : vector<8x8xf32> to vector<8x1xf32>
    %c9 = arith.constant 9 : index
    %c0_15 = arith.constant 0 : index
    %58 = vector.load %arg3[%c9, %c0_15] : memref<40x16xf32, #tpu.memory_space<vmem>>, vector<1x2xf32>
    %59 = vector.broadcast %57 : vector<8x1xf32> to vector<8x2xf32>
    %60 = vector.broadcast %58 : vector<1x2xf32> to vector<8x2xf32>
    %61 = arith.mulf %59, %60 : vector<8x2xf32>
    %62 = arith.addf %56, %61 : vector<8x2xf32>
    %63 = vector.extract_strided_slice %0 {offsets = [0, 0], sizes = [8, 1], strides = [1, 1]} : vector<8x2xf32> to vector<8x1xf32>
    %c10 = arith.constant 10 : index
    %c0_16 = arith.constant 0 : index
    %64 = vector.load %arg3[%c10, %c0_16] : memref<40x16xf32, #tpu.memory_space<vmem>>, vector<1x8xf32>
    %65 = vector.broadcast %63 : vector<8x1xf32> to vector<8x8xf32>
    %66 = vector.broadcast %64 : vector<1x8xf32> to vector<8x8xf32>
    %67 = arith.mulf %65, %66 : vector<8x8xf32>
    %68 = vector.extract_strided_slice %0 {offsets = [0, 1], sizes = [8, 1], strides = [1, 1]} : vector<8x2xf32> to vector<8x1xf32>
    %c11 = arith.constant 11 : index
    %c0_17 = arith.constant 0 : index
    %69 = vector.load %arg3[%c11, %c0_17] : memref<40x16xf32, #tpu.memory_space<vmem>>, vector<1x8xf32>
    %70 = vector.broadcast %68 : vector<8x1xf32> to vector<8x8xf32>
    %71 = vector.broadcast %69 : vector<1x8xf32> to vector<8x8xf32>
    %72 = arith.mulf %70, %71 : vector<8x8xf32>
    %73 = arith.addf %67, %72 : vector<8x8xf32>
    %cst_18 = arith.constant 0.000000e+00 : f32
    %74 = vector.broadcast %cst_18 : f32 to vector<8x8xf32>
    %75 = arith.maximumf %73, %74 : vector<8x8xf32>
    %76 = vector.extract_strided_slice %75 {offsets = [0, 0], sizes = [8, 1], strides = [1, 1]} : vector<8x8xf32> to vector<8x1xf32>
    %c12 = arith.constant 12 : index
    %c0_19 = arith.constant 0 : index
    %77 = vector.load %arg3[%c12, %c0_19] : memref<40x16xf32, #tpu.memory_space<vmem>>, vector<1x2xf32>
    %78 = vector.broadcast %76 : vector<8x1xf32> to vector<8x2xf32>
    %79 = vector.broadcast %77 : vector<1x2xf32> to vector<8x2xf32>
    %80 = arith.mulf %78, %79 : vector<8x2xf32>
    %81 = vector.extract_strided_slice %75 {offsets = [0, 1], sizes = [8, 1], strides = [1, 1]} : vector<8x8xf32> to vector<8x1xf32>
    %c13 = arith.constant 13 : index
    %c0_20 = arith.constant 0 : index
    %82 = vector.load %arg3[%c13, %c0_20] : memref<40x16xf32, #tpu.memory_space<vmem>>, vector<1x2xf32>
    %83 = vector.broadcast %81 : vector<8x1xf32> to vector<8x2xf32>
    %84 = vector.broadcast %82 : vector<1x2xf32> to vector<8x2xf32>
    %85 = arith.mulf %83, %84 : vector<8x2xf32>
    %86 = arith.addf %80, %85 : vector<8x2xf32>
    %87 = vector.extract_strided_slice %75 {offsets = [0, 2], sizes = [8, 1], strides = [1, 1]} : vector<8x8xf32> to vector<8x1xf32>
    %c14 = arith.constant 14 : index
    %c0_21 = arith.constant 0 : index
    %88 = vector.load %arg3[%c14, %c0_21] : memref<40x16xf32, #tpu.memory_space<vmem>>, vector<1x2xf32>
    %89 = vector.broadcast %87 : vector<8x1xf32> to vector<8x2xf32>
    %90 = vector.broadcast %88 : vector<1x2xf32> to vector<8x2xf32>
    %91 = arith.mulf %89, %90 : vector<8x2xf32>
    %92 = arith.addf %86, %91 : vector<8x2xf32>
    %93 = vector.extract_strided_slice %75 {offsets = [0, 3], sizes = [8, 1], strides = [1, 1]} : vector<8x8xf32> to vector<8x1xf32>
    %c15 = arith.constant 15 : index
    %c0_22 = arith.constant 0 : index
    %94 = vector.load %arg3[%c15, %c0_22] : memref<40x16xf32, #tpu.memory_space<vmem>>, vector<1x2xf32>
    %95 = vector.broadcast %93 : vector<8x1xf32> to vector<8x2xf32>
    %96 = vector.broadcast %94 : vector<1x2xf32> to vector<8x2xf32>
    %97 = arith.mulf %95, %96 : vector<8x2xf32>
    %98 = arith.addf %92, %97 : vector<8x2xf32>
    %99 = vector.extract_strided_slice %75 {offsets = [0, 4], sizes = [8, 1], strides = [1, 1]} : vector<8x8xf32> to vector<8x1xf32>
    %c16 = arith.constant 16 : index
    %c0_23 = arith.constant 0 : index
    %100 = vector.load %arg3[%c16, %c0_23] : memref<40x16xf32, #tpu.memory_space<vmem>>, vector<1x2xf32>
    %101 = vector.broadcast %99 : vector<8x1xf32> to vector<8x2xf32>
    %102 = vector.broadcast %100 : vector<1x2xf32> to vector<8x2xf32>
    %103 = arith.mulf %101, %102 : vector<8x2xf32>
    %104 = arith.addf %98, %103 : vector<8x2xf32>
    %105 = vector.extract_strided_slice %75 {offsets = [0, 5], sizes = [8, 1], strides = [1, 1]} : vector<8x8xf32> to vector<8x1xf32>
    %c17 = arith.constant 17 : index
    %c0_24 = arith.constant 0 : index
    %106 = vector.load %arg3[%c17, %c0_24] : memref<40x16xf32, #tpu.memory_space<vmem>>, vector<1x2xf32>
    %107 = vector.broadcast %105 : vector<8x1xf32> to vector<8x2xf32>
    %108 = vector.broadcast %106 : vector<1x2xf32> to vector<8x2xf32>
    %109 = arith.mulf %107, %108 : vector<8x2xf32>
    %110 = arith.addf %104, %109 : vector<8x2xf32>
    %111 = vector.extract_strided_slice %75 {offsets = [0, 6], sizes = [8, 1], strides = [1, 1]} : vector<8x8xf32> to vector<8x1xf32>
    %c18 = arith.constant 18 : index
    %c0_25 = arith.constant 0 : index
    %112 = vector.load %arg3[%c18, %c0_25] : memref<40x16xf32, #tpu.memory_space<vmem>>, vector<1x2xf32>
    %113 = vector.broadcast %111 : vector<8x1xf32> to vector<8x2xf32>
    %114 = vector.broadcast %112 : vector<1x2xf32> to vector<8x2xf32>
    %115 = arith.mulf %113, %114 : vector<8x2xf32>
    %116 = arith.addf %110, %115 : vector<8x2xf32>
    %117 = vector.extract_strided_slice %75 {offsets = [0, 7], sizes = [8, 1], strides = [1, 1]} : vector<8x8xf32> to vector<8x1xf32>
    %c19 = arith.constant 19 : index
    %c0_26 = arith.constant 0 : index
    %118 = vector.load %arg3[%c19, %c0_26] : memref<40x16xf32, #tpu.memory_space<vmem>>, vector<1x2xf32>
    %119 = vector.broadcast %117 : vector<8x1xf32> to vector<8x2xf32>
    %120 = vector.broadcast %118 : vector<1x2xf32> to vector<8x2xf32>
    %121 = arith.mulf %119, %120 : vector<8x2xf32>
    %122 = arith.addf %116, %121 : vector<8x2xf32>
    %c0_27 = arith.constant 0 : index
    %c0_28 = arith.constant 0 : index
    %123 = vector.load %arg5[%c0_27, %c0_28] : memref<8x2xf32, #tpu.memory_space<vmem>>, vector<8x2xf32>
    tpu.vector_store %arg5[%c0_27, %c0_28], %122 {strides = array<i32>} : memref<8x2xf32, #tpu.memory_space<vmem>>, vector<8x2xf32>,
    %cst_29 = arith.constant 5.000000e-01 : f32
    %124 = vector.broadcast %cst_29 : f32 to vector<8x2xf32>
    %125 = arith.mulf %124, %122 : vector<8x2xf32>
    %126 = math.exp %125 : vector<8x2xf32>
    %127 = arith.mulf %2, %126 : vector<8x2xf32>
    %128 = arith.addf %127, %62 : vector<8x2xf32>
    %129 = vector.extract_strided_slice %0 {offsets = [0, 0], sizes = [8, 1], strides = [1, 1]} : vector<8x2xf32> to vector<8x1xf32>
    %c20 = arith.constant 20 : index
    %c0_30 = arith.constant 0 : index
    %130 = vector.load %arg3[%c20, %c0_30] : memref<40x16xf32, #tpu.memory_space<vmem>>, vector<1x16xf32>
    %131 = vector.broadcast %129 : vector<8x1xf32> to vector<8x16xf32>
    %132 = vector.broadcast %130 : vector<1x16xf32> to vector<8x16xf32>
    %133 = arith.mulf %131, %132 : vector<8x16xf32>
    %134 = vector.extract_strided_slice %0 {offsets = [0, 1], sizes = [8, 1], strides = [1, 1]} : vector<8x2xf32> to vector<8x1xf32>
    %c21 = arith.constant 21 : index
    %c0_31 = arith.constant 0 : index
    %135 = vector.load %arg3[%c21, %c0_31] : memref<40x16xf32, #tpu.memory_space<vmem>>, vector<1x16xf32>
    %136 = vector.broadcast %134 : vector<8x1xf32> to vector<8x16xf32>
    %137 = vector.broadcast %135 : vector<1x16xf32> to vector<8x16xf32>
    %138 = arith.mulf %136, %137 : vector<8x16xf32>
    %139 = arith.addf %133, %138 : vector<8x16xf32>
    %140 = vector.extract_strided_slice %128 {offsets = [0, 0], sizes = [8, 1], strides = [1, 1]} : vector<8x2xf32> to vector<8x1xf32>
    %c22 = arith.constant 22 : index
    %c0_32 = arith.constant 0 : index
    %141 = vector.load %arg3[%c22, %c0_32] : memref<40x16xf32, #tpu.memory_space<vmem>>, vector<1x16xf32>
    %142 = vector.broadcast %140 : vector<8x1xf32> to vector<8x16xf32>
    %143 = vector.broadcast %141 : vector<1x16xf32> to vector<8x16xf32>
    %144 = arith.mulf %142, %143 : vector<8x16xf32>
    %145 = vector.extract_strided_slice %128 {offsets = [0, 1], sizes = [8, 1], strides = [1, 1]} : vector<8x2xf32> to vector<8x1xf32>
    %c23 = arith.constant 23 : index
    %c0_33 = arith.constant 0 : index
    %146 = vector.load %arg3[%c23, %c0_33] : memref<40x16xf32, #tpu.memory_space<vmem>>, vector<1x16xf32>
    %147 = vector.broadcast %145 : vector<8x1xf32> to vector<8x16xf32>
    %148 = vector.broadcast %146 : vector<1x16xf32> to vector<8x16xf32>
    %149 = arith.mulf %147, %148 : vector<8x16xf32>
    %150 = arith.addf %144, %149 : vector<8x16xf32>
    %151 = arith.addf %139, %150 : vector<8x16xf32>
    %cst_34 = arith.constant 0.000000e+00 : f32
    %152 = vector.broadcast %cst_34 : f32 to vector<8x16xf32>
    %153 = arith.maximumf %151, %152 : vector<8x16xf32>
    %154 = vector.extract_strided_slice %153 {offsets = [0, 0], sizes = [8, 1], strides = [1, 1]} : vector<8x16xf32> to vector<8x1xf32>
    %c24 = arith.constant 24 : index
    %c0_35 = arith.constant 0 : index
    %155 = vector.load %arg3[%c24, %c0_35] : memref<40x16xf32, #tpu.memory_space<vmem>>, vector<1x2xf32>
    %156 = vector.broadcast %154 : vector<8x1xf32> to vector<8x2xf32>
    %157 = vector.broadcast %155 : vector<1x2xf32> to vector<8x2xf32>
    %158 = arith.mulf %156, %157 : vector<8x2xf32>
    %159 = vector.extract_strided_slice %153 {offsets = [0, 1], sizes = [8, 1], strides = [1, 1]} : vector<8x16xf32> to vector<8x1xf32>
    %c25 = arith.constant 25 : index
    %c0_36 = arith.constant 0 : index
    %160 = vector.load %arg3[%c25, %c0_36] : memref<40x16xf32, #tpu.memory_space<vmem>>, vector<1x2xf32>
    %161 = vector.broadcast %159 : vector<8x1xf32> to vector<8x2xf32>
    %162 = vector.broadcast %160 : vector<1x2xf32> to vector<8x2xf32>
    %163 = arith.mulf %161, %162 : vector<8x2xf32>
    %164 = arith.addf %158, %163 : vector<8x2xf32>
    %165 = vector.extract_strided_slice %153 {offsets = [0, 2], sizes = [8, 1], strides = [1, 1]} : vector<8x16xf32> to vector<8x1xf32>
    %c26 = arith.constant 26 : index
    %c0_37 = arith.constant 0 : index
    %166 = vector.load %arg3[%c26, %c0_37] : memref<40x16xf32, #tpu.memory_space<vmem>>, vector<1x2xf32>
    %167 = vector.broadcast %165 : vector<8x1xf32> to vector<8x2xf32>
    %168 = vector.broadcast %166 : vector<1x2xf32> to vector<8x2xf32>
    %169 = arith.mulf %167, %168 : vector<8x2xf32>
    %170 = arith.addf %164, %169 : vector<8x2xf32>
    %171 = vector.extract_strided_slice %153 {offsets = [0, 3], sizes = [8, 1], strides = [1, 1]} : vector<8x16xf32> to vector<8x1xf32>
    %c27 = arith.constant 27 : index
    %c0_38 = arith.constant 0 : index
    %172 = vector.load %arg3[%c27, %c0_38] : memref<40x16xf32, #tpu.memory_space<vmem>>, vector<1x2xf32>
    %173 = vector.broadcast %171 : vector<8x1xf32> to vector<8x2xf32>
    %174 = vector.broadcast %172 : vector<1x2xf32> to vector<8x2xf32>
    %175 = arith.mulf %173, %174 : vector<8x2xf32>
    %176 = arith.addf %170, %175 : vector<8x2xf32>
    %177 = vector.extract_strided_slice %153 {offsets = [0, 4], sizes = [8, 1], strides = [1, 1]} : vector<8x16xf32> to vector<8x1xf32>
    %c28 = arith.constant 28 : index
    %c0_39 = arith.constant 0 : index
    %178 = vector.load %arg3[%c28, %c0_39] : memref<40x16xf32, #tpu.memory_space<vmem>>, vector<1x2xf32>
    %179 = vector.broadcast %177 : vector<8x1xf32> to vector<8x2xf32>
    %180 = vector.broadcast %178 : vector<1x2xf32> to vector<8x2xf32>
    %181 = arith.mulf %179, %180 : vector<8x2xf32>
    %182 = arith.addf %176, %181 : vector<8x2xf32>
    %183 = vector.extract_strided_slice %153 {offsets = [0, 5], sizes = [8, 1], strides = [1, 1]} : vector<8x16xf32> to vector<8x1xf32>
    %c29 = arith.constant 29 : index
    %c0_40 = arith.constant 0 : index
    %184 = vector.load %arg3[%c29, %c0_40] : memref<40x16xf32, #tpu.memory_space<vmem>>, vector<1x2xf32>
    %185 = vector.broadcast %183 : vector<8x1xf32> to vector<8x2xf32>
    %186 = vector.broadcast %184 : vector<1x2xf32> to vector<8x2xf32>
    %187 = arith.mulf %185, %186 : vector<8x2xf32>
    %188 = arith.addf %182, %187 : vector<8x2xf32>
    %189 = vector.extract_strided_slice %153 {offsets = [0, 6], sizes = [8, 1], strides = [1, 1]} : vector<8x16xf32> to vector<8x1xf32>
    %c30 = arith.constant 30 : index
    %c0_41 = arith.constant 0 : index
    %190 = vector.load %arg3[%c30, %c0_41] : memref<40x16xf32, #tpu.memory_space<vmem>>, vector<1x2xf32>
    %191 = vector.broadcast %189 : vector<8x1xf32> to vector<8x2xf32>
    %192 = vector.broadcast %190 : vector<1x2xf32> to vector<8x2xf32>
    %193 = arith.mulf %191, %192 : vector<8x2xf32>
    %194 = arith.addf %188, %193 : vector<8x2xf32>
    %195 = vector.extract_strided_slice %153 {offsets = [0, 7], sizes = [8, 1], strides = [1, 1]} : vector<8x16xf32> to vector<8x1xf32>
    %c31 = arith.constant 31 : index
    %c0_42 = arith.constant 0 : index
    %196 = vector.load %arg3[%c31, %c0_42] : memref<40x16xf32, #tpu.memory_space<vmem>>, vector<1x2xf32>
    %197 = vector.broadcast %195 : vector<8x1xf32> to vector<8x2xf32>
    %198 = vector.broadcast %196 : vector<1x2xf32> to vector<8x2xf32>
    %199 = arith.mulf %197, %198 : vector<8x2xf32>
    %200 = arith.addf %194, %199 : vector<8x2xf32>
    %201 = vector.extract_strided_slice %153 {offsets = [0, 8], sizes = [8, 1], strides = [1, 1]} : vector<8x16xf32> to vector<8x1xf32>
    %c32 = arith.constant 32 : index
    %c0_43 = arith.constant 0 : index
    %202 = vector.load %arg3[%c32, %c0_43] : memref<40x16xf32, #tpu.memory_space<vmem>>, vector<1x2xf32>
    %203 = vector.broadcast %201 : vector<8x1xf32> to vector<8x2xf32>
    %204 = vector.broadcast %202 : vector<1x2xf32> to vector<8x2xf32>
    %205 = arith.mulf %203, %204 : vector<8x2xf32>
    %206 = arith.addf %200, %205 : vector<8x2xf32>
    %207 = vector.extract_strided_slice %153 {offsets = [0, 9], sizes = [8, 1], strides = [1, 1]} : vector<8x16xf32> to vector<8x1xf32>
    %c33 = arith.constant 33 : index
    %c0_44 = arith.constant 0 : index
    %208 = vector.load %arg3[%c33, %c0_44] : memref<40x16xf32, #tpu.memory_space<vmem>>, vector<1x2xf32>
    %209 = vector.broadcast %207 : vector<8x1xf32> to vector<8x2xf32>
    %210 = vector.broadcast %208 : vector<1x2xf32> to vector<8x2xf32>
    %211 = arith.mulf %209, %210 : vector<8x2xf32>
    %212 = arith.addf %206, %211 : vector<8x2xf32>
    %213 = vector.extract_strided_slice %153 {offsets = [0, 10], sizes = [8, 1], strides = [1, 1]} : vector<8x16xf32> to vector<8x1xf32>
    %c34 = arith.constant 34 : index
    %c0_45 = arith.constant 0 : index
    %214 = vector.load %arg3[%c34, %c0_45] : memref<40x16xf32, #tpu.memory_space<vmem>>, vector<1x2xf32>
    %215 = vector.broadcast %213 : vector<8x1xf32> to vector<8x2xf32>
    %216 = vector.broadcast %214 : vector<1x2xf32> to vector<8x2xf32>
    %217 = arith.mulf %215, %216 : vector<8x2xf32>
    %218 = arith.addf %212, %217 : vector<8x2xf32>
    %219 = vector.extract_strided_slice %153 {offsets = [0, 11], sizes = [8, 1], strides = [1, 1]} : vector<8x16xf32> to vector<8x1xf32>
    %c35 = arith.constant 35 : index
    %c0_46 = arith.constant 0 : index
    %220 = vector.load %arg3[%c35, %c0_46] : memref<40x16xf32, #tpu.memory_space<vmem>>, vector<1x2xf32>
    %221 = vector.broadcast %219 : vector<8x1xf32> to vector<8x2xf32>
    %222 = vector.broadcast %220 : vector<1x2xf32> to vector<8x2xf32>
    %223 = arith.mulf %221, %222 : vector<8x2xf32>
    %224 = arith.addf %218, %223 : vector<8x2xf32>
    %225 = vector.extract_strided_slice %153 {offsets = [0, 12], sizes = [8, 1], strides = [1, 1]} : vector<8x16xf32> to vector<8x1xf32>
    %c36 = arith.constant 36 : index
    %c0_47 = arith.constant 0 : index
    %226 = vector.load %arg3[%c36, %c0_47] : memref<40x16xf32, #tpu.memory_space<vmem>>, vector<1x2xf32>
    %227 = vector.broadcast %225 : vector<8x1xf32> to vector<8x2xf32>
    %228 = vector.broadcast %226 : vector<1x2xf32> to vector<8x2xf32>
    %229 = arith.mulf %227, %228 : vector<8x2xf32>
    %230 = arith.addf %224, %229 : vector<8x2xf32>
    %231 = vector.extract_strided_slice %153 {offsets = [0, 13], sizes = [8, 1], strides = [1, 1]} : vector<8x16xf32> to vector<8x1xf32>
    %c37 = arith.constant 37 : index
    %c0_48 = arith.constant 0 : index
    %232 = vector.load %arg3[%c37, %c0_48] : memref<40x16xf32, #tpu.memory_space<vmem>>, vector<1x2xf32>
    %233 = vector.broadcast %231 : vector<8x1xf32> to vector<8x2xf32>
    %234 = vector.broadcast %232 : vector<1x2xf32> to vector<8x2xf32>
    %235 = arith.mulf %233, %234 : vector<8x2xf32>
    %236 = arith.addf %230, %235 : vector<8x2xf32>
    %237 = vector.extract_strided_slice %153 {offsets = [0, 14], sizes = [8, 1], strides = [1, 1]} : vector<8x16xf32> to vector<8x1xf32>
    %c38 = arith.constant 38 : index
    %c0_49 = arith.constant 0 : index
    %238 = vector.load %arg3[%c38, %c0_49] : memref<40x16xf32, #tpu.memory_space<vmem>>, vector<1x2xf32>
    %239 = vector.broadcast %237 : vector<8x1xf32> to vector<8x2xf32>
    %240 = vector.broadcast %238 : vector<1x2xf32> to vector<8x2xf32>
    %241 = arith.mulf %239, %240 : vector<8x2xf32>
    %242 = arith.addf %236, %241 : vector<8x2xf32>
    %243 = vector.extract_strided_slice %153 {offsets = [0, 15], sizes = [8, 1], strides = [1, 1]} : vector<8x16xf32> to vector<8x1xf32>
    %c39 = arith.constant 39 : index
    %c0_50 = arith.constant 0 : index
    %244 = vector.load %arg3[%c39, %c0_50] : memref<40x16xf32, #tpu.memory_space<vmem>>, vector<1x2xf32>
    %245 = vector.broadcast %243 : vector<8x1xf32> to vector<8x2xf32>
    %246 = vector.broadcast %244 : vector<1x2xf32> to vector<8x2xf32>
    %247 = arith.mulf %245, %246 : vector<8x2xf32>
    %248 = arith.addf %242, %247 : vector<8x2xf32>
    %249 = arith.subf %248, %1 : vector<8x2xf32>
    %250 = math.absf %249 : vector<8x2xf32>
    %cst_51 = arith.constant 1.000000e+00 : f32
    %251 = vector.broadcast %cst_51 : f32 to vector<8x2xf32>
    %252 = arith.cmpf olt, %250, %251 : vector<8x2xf32>
    %cst_52 = arith.constant 5.000000e-01 : f32
    %253 = vector.broadcast %cst_52 : f32 to vector<8x2xf32>
    %254 = arith.mulf %253, %249 : vector<8x2xf32>
    %255 = arith.mulf %254, %249 : vector<8x2xf32>
    %cst_53 = arith.constant 5.000000e-01 : f32
    %256 = vector.broadcast %cst_53 : f32 to vector<8x2xf32>
    %257 = arith.subf %250, %256 : vector<8x2xf32>
    %258 = arith.select %252, %255, %257 : vector<8x2xi1>, vector<8x2xf32>
    %259 = vector.shape_cast %258 : vector<8x2xf32> to vector<1x8x2xf32>
    %cst_54 = arith.constant dense<0.000000e+00> : vector<1xf32>
    %260 = vector.multi_reduction <add>, %259, %cst_54 [1, 2] : vector<1x8x2xf32> to vector<1xf32>
    %261 = vector.shape_cast %260 : vector<1xf32> to vector<1x1x1xf32>
    %262 = vector.extract %261[0, 0, 0] : f32 from vector<1x1x1xf32>
    %cst_55 = arith.constant 1.600000e+01 : f32
    %263 = arith.divf %262, %cst_55 : f32
    %264 = arith.mulf %126, %126 : vector<8x2xf32>
    %265 = arith.mulf %264, %264 : vector<8x2xf32>
    %266 = arith.mulf %62, %62 : vector<8x2xf32>
    %267 = arith.addf %265, %266 : vector<8x2xf32>
    %cst_56 = arith.constant 1.000000e+00 : f32
    %268 = vector.broadcast %cst_56 : f32 to vector<8x2xf32>
    %269 = arith.subf %267, %268 : vector<8x2xf32>
    %cst_57 = arith.constant 5.000000e-01 : f32
    %270 = vector.broadcast %cst_57 : f32 to vector<8x2xf32>
    %271 = arith.mulf %270, %269 : vector<8x2xf32>
    %272 = arith.subf %271, %122 : vector<8x2xf32>
    %cst_58 = arith.constant dense<0.000000e+00> : vector<8xf32>
    %273 = vector.multi_reduction <add>, %272, %cst_58 [1] : vector<8x2xf32> to vector<8xf32>
    %274 = vector.shape_cast %273 : vector<8xf32> to vector<8x1xf32>
    %275 = vector.shape_cast %274 : vector<8x1xf32> to vector<1x8x1xf32>
    %cst_59 = arith.constant dense<0.000000e+00> : vector<1xf32>
    %276 = vector.multi_reduction <add>, %275, %cst_59 [1, 2] : vector<1x8x1xf32> to vector<1xf32>
    %277 = vector.shape_cast %276 : vector<1xf32> to vector<1x1x1xf32>
    %278 = vector.extract %277[0, 0, 0] : f32 from vector<1x1x1xf32>
    %cst_60 = arith.constant 8.000000e+00 : f32
    %279 = arith.divf %278, %cst_60 : f32
    %c0_61 = arith.constant 0 : index
    %c0_62 = arith.constant 0 : index
    %280 = vector.load %arg3[%c0_61, %c0_62] : memref<40x16xf32, #tpu.memory_space<vmem>>, vector<40x16xf32>
    %281 = arith.mulf %280, %280 : vector<40x16xf32>
    %cst_63 = arith.constant dense<0.000000e+00> : vector<40xf32>
    %282 = vector.multi_reduction <add>, %281, %cst_63 [1] : vector<40x16xf32> to vector<40xf32>
    %283 = vector.shape_cast %282 : vector<40xf32> to vector<40x1xf32>
    %284 = vector.extract_strided_slice %283 {offsets = [0, 0], sizes = [2, 1], strides = [1, 1]} : vector<40x1xf32> to vector<2x1xf32>
    %285 = vector.shape_cast %284 : vector<2x1xf32> to vector<1x2x1xf32>
    %cst_64 = arith.constant dense<0.000000e+00> : vector<1xf32>
    %286 = vector.multi_reduction <add>, %285, %cst_64 [1, 2] : vector<1x2x1xf32> to vector<1xf32>
    %287 = vector.shape_cast %286 : vector<1xf32> to vector<1x1x1xf32>
    %288 = vector.extract %287[0, 0, 0] : f32 from vector<1x1x1xf32>
    %289 = math.sqrt %288 : f32
    %290 = vector.extract_strided_slice %283 {offsets = [2, 0], sizes = [8, 1], strides = [1, 1]} : vector<40x1xf32> to vector<8x1xf32>
    %291 = vector.shape_cast %290 : vector<8x1xf32> to vector<1x8x1xf32>
    %cst_65 = arith.constant dense<0.000000e+00> : vector<1xf32>
    %292 = vector.multi_reduction <add>, %291, %cst_65 [1, 2] : vector<1x8x1xf32> to vector<1xf32>
    %293 = vector.shape_cast %292 : vector<1xf32> to vector<1x1x1xf32>
    %294 = vector.extract %293[0, 0, 0] : f32 from vector<1x1x1xf32>
    %295 = math.sqrt %294 : f32
    %296 = arith.addf %289, %295 : f32
    %297 = vector.extract_strided_slice %283 {offsets = [10, 0], sizes = [2, 1], strides = [1, 1]} : vector<40x1xf32> to vector<2x1xf32>
    %298 = vector.shape_cast %297 : vector<2x1xf32> to vector<1x2x1xf32>
    %cst_66 = arith.constant dense<0.000000e+00> : vector<1xf32>
    %299 = vector.multi_reduction <add>, %298, %cst_66 [1, 2] : vector<1x2x1xf32> to vector<1xf32>
    %300 = vector.shape_cast %299 : vector<1xf32> to vector<1x1x1xf32>
    %301 = vector.extract %300[0, 0, 0] : f32 from vector<1x1x1xf32>
    %302 = math.sqrt %301 : f32
    %303 = arith.addf %296, %302 : f32
    %304 = vector.extract_strided_slice %283 {offsets = [12, 0], sizes = [8, 1], strides = [1, 1]} : vector<40x1xf32> to vector<8x1xf32>
    %305 = vector.shape_cast %304 : vector<8x1xf32> to vector<1x8x1xf32>
    %cst_67 = arith.constant dense<0.000000e+00> : vector<1xf32>
    %306 = vector.multi_reduction <add>, %305, %cst_67 [1, 2] : vector<1x8x1xf32> to vector<1xf32>
    %307 = vector.shape_cast %306 : vector<1xf32> to vector<1x1x1xf32>
    %308 = vector.extract %307[0, 0, 0] : f32 from vector<1x1x1xf32>
    %309 = math.sqrt %308 : f32
    %310 = arith.addf %303, %309 : f32
    %311 = vector.extract_strided_slice %283 {offsets = [20, 0], sizes = [4, 1], strides = [1, 1]} : vector<40x1xf32> to vector<4x1xf32>
    %312 = vector.shape_cast %311 : vector<4x1xf32> to vector<1x4x1xf32>
    %cst_68 = arith.constant dense<0.000000e+00> : vector<1xf32>
    %313 = vector.multi_reduction <add>, %312, %cst_68 [1, 2] : vector<1x4x1xf32> to vector<1xf32>
    %314 = vector.shape_cast %313 : vector<1xf32> to vector<1x1x1xf32>
    %315 = vector.extract %314[0, 0, 0] : f32 from vector<1x1x1xf32>
    %316 = math.sqrt %315 : f32
    %317 = arith.addf %310, %316 : f32
    %318 = vector.extract_strided_slice %283 {offsets = [24, 0], sizes = [16, 1], strides = [1, 1]} : vector<40x1xf32> to vector<16x1xf32>
    %319 = vector.shape_cast %318 : vector<16x1xf32> to vector<1x16x1xf32>
    %cst_69 = arith.constant dense<0.000000e+00> : vector<1xf32>
    %320 = vector.multi_reduction <add>, %319, %cst_69 [1, 2] : vector<1x16x1xf32> to vector<1xf32>
    %321 = vector.shape_cast %320 : vector<1xf32> to vector<1x1x1xf32>
    %322 = vector.extract %321[0, 0, 0] : f32 from vector<1x1x1xf32>
    %323 = math.sqrt %322 : f32
    %324 = arith.addf %317, %323 : f32
    %cst_70 = arith.constant 5.000000e-05 : f32
    %325 = arith.mulf %279, %cst_70 : f32
    %326 = arith.addf %263, %325 : f32
    %cst_71 = arith.constant 5.000000e-05 : f32
    %327 = arith.mulf %324, %cst_71 : f32
    %328 = arith.addf %326, %327 : f32
    %329 = vector.broadcast %328 : f32 to vector<1x1xf32>
    %c0_72 = arith.constant 0 : index
    %c0_73 = arith.constant 0 : index
    %330 = vector.load %arg4[%c0_72, %c0_73] : memref<1x1xf32, #tpu.memory_space<vmem>>, vector<1x1xf32>
    tpu.vector_store %arg4[%c0_72, %c0_73], %329 {strides = array<i32>} : memref<1x1xf32, #tpu.memory_space<vmem>>, vector<1x1xf32>,
    return
  }
}

</mosaic_0001>

<llo_original>
// kernel: tpu_custom_call.1
$region0: #{tpu_custom_call.1}
  #allocation0 [shape = 'u32[]', space=smem, size = 0x4, offset = 0x4, fixed_abs, tag = 'smem constant byte address 0x4 - core index']
  #allocation1 [shape = 'u32[144,128]{1,0:T(1,128)}', space=vmem, size = 0x12000, scoped, tag = 'internal scratch']
  %s0 = inlined_call_operand.vmem [shape: f32[8,2], index: 0, kind: input, shape index: {}]
  %s1 = inlined_call_operand.vmem [shape: f32[8,2], index: 1, kind: input, shape index: {}]
  %s2 = inlined_call_operand.vmem [shape: f32[8,2], index: 2, kind: input, shape index: {}]
  %s3 = inlined_call_operand.vmem [shape: f32[40,16], index: 3, kind: input, shape index: {}]
  %s4 = inlined_call_operand.hbm [shape: f32[1,1], index: 4, kind: output, shape index: {0}]
  %s5 = inlined_call_operand.vmem [shape: f32[8,2], index: 5, kind: output, shape index: {1}]
  %6 = xla_tuple %s4, %s5
  %s7 = sld [smem:[#allocation0]]
  $region34: #{tpu_custom_call.1} parent=0
    _
  %s9 = ssub.s32 1, %s7
  %s10 = scalar_select 0, %s9, %s7
  $region1: #{tpu_custom_call.1} parent=0
    #allocation2 [shape = 'u8[512]{0}', space=vmem, size = 0x400, scoped, tag = 'output window, operand 0, single buffered']
    #allocation3 [shape = 's32[1]{0}', space=sflag, size = 0x4, scoped, tag = 'scoped memory for tpu_custom_call.1']
    %11 = vsyncpa [#allocation3], 0
    // Predicated region
    $region2: #{tpu_custom_call.1} parent=1 // pred_check
      _
    $region3: #{tpu_custom_call.1} parent=1 // pred_check_branch
      %13 = sbr.rel (0) target = $region5
    $region4: #{tpu_custom_call.1} parent=1 // pred_region
      _
    $region5: #{tpu_custom_call.1} parent=1 // pred_fallthru
      _
    // Predicated region
    $region6: #{tpu_custom_call.1} parent=1 // pred_check
      _
    $region7: #{tpu_custom_call.1} parent=1 // pred_check_branch
      %15 = sbr.rel (0) target = $region9
    $region8: #{tpu_custom_call.1} parent=1 // pred_region
      _
    $region9: #{tpu_custom_call.1} parent=1 // pred_fallthru
      _
    // Predicated region
    $region10: #{tpu_custom_call.1} parent=1 // pred_check
      _
    $region11: #{tpu_custom_call.1} parent=1 // pred_check_branch
      %17 = sbr.rel (0) target = $region13
    $region12: #{tpu_custom_call.1} parent=1 // pred_region
      _
    $region13: #{tpu_custom_call.1} parent=1 // pred_fallthru
      _
    // Predicated region
    $region14: #{tpu_custom_call.1} parent=1 // pred_check
      _
    $region15: #{tpu_custom_call.1} parent=1 // pred_check_branch
      %19 = sbr.rel (0) target = $region17
    $region16: #{tpu_custom_call.1} parent=1 // pred_region
      _
    $region17: #{tpu_custom_call.1} parent=1 // pred_fallthru
      _
    %v20 = vld [vmem:[%s0] sm:$0xff]
    %v21 = vld [vmem:[%s1] sm:$0xff]
    %v22 = vld [vmem:[%s2] sm:$0xff]
    %v23 = vld [vmem:[%s3] sm:$0x1]
    %25 = vset.pattern.permute.xlu0 0
    %26 = vperm.xlu0 %25, %v20
    %v27 = vpop.permute.xlu0 %26
    %v29 = vlaneseq
    %v30 = vshrl.u32 %v29, 7
    %v31 = vsub.s32 0, %v30
    %v32 = vrot.slane %v23, %v31
    %v33 = vmul.f32 %v27, %v32
    %v34 = vld [vmem:[%s3 + $0x1] sm:$0x1]
    %35 = vset.pattern.permute.xlu0 1
    %36 = vperm.xlu0 %35, %v20
    %v37 = vpop.permute.xlu0 %36
    %v39 = vlaneseq
    %v40 = vshrl.u32 %v39, 7
    %v41 = vsub.s32 0, %v40
    %v42 = vrot.slane %v34, %v41
    %v43 = vmul.f32 %v37, %v42
    %v44 = vadd.f32 %v33, %v43
    %v45 = vmax.f32 %v44, 0.0
    %v46 = vld [vmem:[%s3 + $0x2] sm:$0x1]
    %48 = vset.pattern.permute.xlu0 0
    %49 = vperm.xlu0 %48, %v45
    %v50 = vpop.permute.xlu0 %49
    %v52 = vlaneseq
    %v53 = vshrl.u32 %v52, 7
    %v54 = vsub.s32 0, %v53
    %v55 = vrot.slane %v46, %v54
    %v56 = vmul.f32 %v50, %v55
    %v57 = vld [vmem:[%s3 + $0x3] sm:$0x1]
    %58 = vset.pattern.permute.xlu0 1
    %59 = vperm.xlu0 %58, %v45
    %v60 = vpop.permute.xlu0 %59
    %v62 = vlaneseq
    %v63 = vshrl.u32 %v62, 7
    %v64 = vsub.s32 0, %v63
    %v65 = vrot.slane %v57, %v64
    %v66 = vmul.f32 %v60, %v65
    %v67 = vadd.f32 %v56, %v66
    %v68 = vld [vmem:[%s3 + $0x4] sm:$0x1]
    %69 = vset.pattern.permute.xlu0 2
    %70 = vperm.xlu0 %69, %v45
    %v71 = vpop.permute.xlu0 %70
    %v73 = vlaneseq
    %v74 = vshrl.u32 %v73, 7
    %v75 = vsub.s32 0, %v74
    %v76 = vrot.slane %v68, %v75
    %v77 = vmul.f32 %v71, %v76
    %v78 = vadd.f32 %v67, %v77
    %v79 = vld [vmem:[%s3 + $0x5] sm:$0x1]
    %80 = vset.pattern.permute.xlu0 3
    %81 = vperm.xlu0 %80, %v45
    %v82 = vpop.permute.xlu0 %81
    %v84 = vlaneseq
    %v85 = vshrl.u32 %v84, 7
    %v86 = vsub.s32 0, %v85
    %v87 = vrot.slane %v79, %v86
    %v88 = vmul.f32 %v82, %v87
    %v89 = vadd.f32 %v78, %v88
    %v90 = vld [vmem:[%s3 + $0x6] sm:$0x1]
    %91 = vset.pattern.permute.xlu0 4
    %92 = vperm.xlu0 %91, %v45
    %v93 = vpop.permute.xlu0 %92
    %v95 = vlaneseq
    %v96 = vshrl.u32 %v95, 7
    %v97 = vsub.s32 0, %v96
    %v98 = vrot.slane %v90, %v97
    %v99 = vmul.f32 %v93, %v98
    %v100 = vadd.f32 %v89, %v99
    %v101 = vld [vmem:[%s3 + $0x7] sm:$0x1]
    %102 = vset.pattern.permute.xlu0 5
    %103 = vperm.xlu0 %102, %v45
    %v104 = vpop.permute.xlu0 %103
    %v106 = vlaneseq
    %v107 = vshrl.u32 %v106, 7
    %v108 = vsub.s32 0, %v107
    %v109 = vrot.slane %v101, %v108
    %v110 = vmul.f32 %v104, %v109
    %v111 = vadd.f32 %v100, %v110
    %v112 = vld [vmem:[%s3 + $0x8] sm:$0x1]
    %113 = vset.pattern.permute.xlu0 6
    %114 = vperm.xlu0 %113, %v45
    %v115 = vpop.permute.xlu0 %114
    %v117 = vlaneseq
    %v118 = vshrl.u32 %v117, 7
    %v119 = vsub.s32 0, %v118
    %v120 = vrot.slane %v112, %v119
    %v121 = vmul.f32 %v115, %v120
    %v122 = vadd.f32 %v111, %v121
    %v123 = vld [vmem:[%s3 + $0x9] sm:$0x1]
    %124 = vset.pattern.permute.xlu0 7
    %125 = vperm.xlu0 %124, %v45
    %v126 = vpop.permute.xlu0 %125
    %v128 = vlaneseq
    %v129 = vshrl.u32 %v128, 7
    %v130 = vsub.s32 0, %v129
    %v131 = vrot.slane %v123, %v130
    %v132 = vmul.f32 %v126, %v131
    %v133 = vadd.f32 %v122, %v132
    %v134 = vld [vmem:[%s3 + $0xa] sm:$0x1]
    %v135 = vlaneseq
    %v136 = vshrl.u32 %v135, 7
    %v137 = vsub.s32 0, %v136
    %v138 = vrot.slane %v134, %v137
    %v139 = vmul.f32 %v27, %v138
    %v140 = vld [vmem:[%s3 + $0xb] sm:$0x1]
    %v141 = vlaneseq
    %v142 = vshrl.u32 %v141, 7
    %v143 = vsub.s32 0, %v142
    %v144 = vrot.slane %v140, %v143
    %v145 = vmul.f32 %v37, %v144
    %v146 = vadd.f32 %v139, %v145
    %v147 = vmax.f32 %v146, 0.0
    %v148 = vld [vmem:[%s3 + $0xc] sm:$0x1]
    %150 = vset.pattern.permute.xlu0 0
    %151 = vperm.xlu0 %150, %v147
    %v152 = vpop.permute.xlu0 %151
    %v154 = vlaneseq
    %v155 = vshrl.u32 %v154, 7
    %v156 = vsub.s32 0, %v155
    %v157 = vrot.slane %v148, %v156
    %v158 = vmul.f32 %v152, %v157
    %v159 = vld [vmem:[%s3 + $0xd] sm:$0x1]
    %160 = vset.pattern.permute.xlu0 1
    %161 = vperm.xlu0 %160, %v147
    %v162 = vpop.permute.xlu0 %161
    %v164 = vlaneseq
    %v165 = vshrl.u32 %v164, 7
    %v166 = vsub.s32 0, %v165
    %v167 = vrot.slane %v159, %v166
    %v168 = vmul.f32 %v162, %v167
    %v169 = vadd.f32 %v158, %v168
    %v170 = vld [vmem:[%s3 + $0xe] sm:$0x1]
    %171 = vset.pattern.permute.xlu0 2
    %172 = vperm.xlu0 %171, %v147
    %v173 = vpop.permute.xlu0 %172
    %v175 = vlaneseq
    %v176 = vshrl.u32 %v175, 7
    %v177 = vsub.s32 0, %v176
    %v178 = vrot.slane %v170, %v177
    %v179 = vmul.f32 %v173, %v178
    %v180 = vadd.f32 %v169, %v179
    %v181 = vld [vmem:[%s3 + $0xf] sm:$0x1]
    %182 = vset.pattern.permute.xlu0 3
    %183 = vperm.xlu0 %182, %v147
    %v184 = vpop.permute.xlu0 %183
    %v186 = vlaneseq
    %v187 = vshrl.u32 %v186, 7
    %v188 = vsub.s32 0, %v187
    %v189 = vrot.slane %v181, %v188
    %v190 = vmul.f32 %v184, %v189
    %v191 = vadd.f32 %v180, %v190
    %v192 = vld [vmem:[%s3 + $0x10] sm:$0x1]
    %193 = vset.pattern.permute.xlu0 4
    %194 = vperm.xlu0 %193, %v147
    %v195 = vpop.permute.xlu0 %194
    %v197 = vlaneseq
    %v198 = vshrl.u32 %v197, 7
    %v199 = vsub.s32 0, %v198
    %v200 = vrot.slane %v192, %v199
    %v201 = vmul.f32 %v195, %v200
    %v202 = vadd.f32 %v191, %v201
    %v203 = vld [vmem:[%s3 + $0x11] sm:$0x1]
    %204 = vset.pattern.permute.xlu0 5
    %205 = vperm.xlu0 %204, %v147
    %v206 = vpop.permute.xlu0 %205
    %v208 = vlaneseq
    %v209 = vshrl.u32 %v208, 7
    %v210 = vsub.s32 0, %v209
    %v211 = vrot.slane %v203, %v210
    %v212 = vmul.f32 %v206, %v211
    %v213 = vadd.f32 %v202, %v212
    %v214 = vld [vmem:[%s3 + $0x12] sm:$0x1]
    %215 = vset.pattern.permute.xlu0 6
    %216 = vperm.xlu0 %215, %v147
    %v217 = vpop.permute.xlu0 %216
    %v219 = vlaneseq
    %v220 = vshrl.u32 %v219, 7
    %v221 = vsub.s32 0, %v220
    %v222 = vrot.slane %v214, %v221
    %v223 = vmul.f32 %v217, %v222
    %v224 = vadd.f32 %v213, %v223
    %v225 = vld [vmem:[%s3 + $0x13] sm:$0x1]
    %226 = vset.pattern.permute.xlu0 7
    %227 = vperm.xlu0 %226, %v147
    %v228 = vpop.permute.xlu0 %227
    %v230 = vlaneseq
    %v231 = vshrl.u32 %v230, 7
    %v232 = vsub.s32 0, %v231
    %v233 = vrot.slane %v225, %v232
    %v234 = vmul.f32 %v228, %v233
    %v235 = vadd.f32 %v224, %v234
    %vm236 = vcmask 15360
    %237 = vst.msk [vmem:[%s5] sm:$0xff] %vm236, %v235
    %v238 = vmul.f32 %v235, 0.5
    %v239 = vmul.f32 %v238, 1.442695
    %v240 = vpow.pop %v239
    %v241 = vmul.f32 %v22, %v240
    %v242 = vadd.f32 %v241, %v133
    %v243 = vld [vmem:[%s3 + $0x14] sm:$0x1]
    %v244 = vlaneseq
    %v245 = vshrl.u32 %v244, 7
    %v246 = vsub.s32 0, %v245
    %v247 = vrot.slane %v243, %v246
    %v248 = vmul.f32 %v27, %v247
    %v249 = vld [vmem:[%s3 + $0x15] sm:$0x1]
    %v250 = vlaneseq
    %v251 = vshrl.u32 %v250, 7
    %v252 = vsub.s32 0, %v251
    %v253 = vrot.slane %v249, %v252
    %v254 = vmul.f32 %v37, %v253
    %v255 = vadd.f32 %v248, %v254
    %v256 = vld [vmem:[%s3 + $0x16] sm:$0x1]
    %258 = vset.pattern.permute.xlu0 0
    %259 = vperm.xlu0 %258, %v242
    %v260 = vpop.permute.xlu0 %259
    %v262 = vlaneseq
    %v263 = vshrl.u32 %v262, 7
    %v264 = vsub.s32 0, %v263
    %v265 = vrot.slane %v256, %v264
    %v266 = vmul.f32 %v260, %v265
    %v267 = vld [vmem:[%s3 + $0x17] sm:$0x1]
    %268 = vset.pattern.permute.xlu0 1
    %269 = vperm.xlu0 %268, %v242
    %v270 = vpop.permute.xlu0 %269
    %v272 = vlaneseq
    %v273 = vshrl.u32 %v272, 7
    %v274 = vsub.s32 0, %v273
    %v275 = vrot.slane %v267, %v274
    %v276 = vmul.f32 %v270, %v275
    %v277 = vadd.f32 %v266, %v276
    %v278 = vadd.f32 %v255, %v277
    %v279 = vmax.f32 %v278, 0.0
    %v280 = vld [vmem:[%s3 + $0x18] sm:$0x1]
    %282 = vset.pattern.permute.xlu0 0
    %283 = vperm.xlu0 %282, %v279
    %v284 = vpop.permute.xlu0 %283
    %v286 = vlaneseq
    %v287 = vshrl.u32 %v286, 7
    %v288 = vsub.s32 0, %v287
    %v289 = vrot.slane %v280, %v288
    %v290 = vmul.f32 %v284, %v289
    %v291 = vld [vmem:[%s3 + $0x19] sm:$0x1]
    %292 = vset.pattern.permute.xlu0 1
    %293 = vperm.xlu0 %292, %v279
    %v294 = vpop.permute.xlu0 %293
    %v296 = vlaneseq
    %v297 = vshrl.u32 %v296, 7
    %v298 = vsub.s32 0, %v297
    %v299 = vrot.slane %v291, %v298
    %v300 = vmul.f32 %v294, %v299
    %v301 = vadd.f32 %v290, %v300
    %v302 = vld [vmem:[%s3 + $0x1a] sm:$0x1]
    %303 = vset.pattern.permute.xlu0 2
    %304 = vperm.xlu0 %303, %v279
    %v305 = vpop.permute.xlu0 %304
    %v307 = vlaneseq
    %v308 = vshrl.u32 %v307, 7
    %v309 = vsub.s32 0, %v308
    %v310 = vrot.slane %v302, %v309
    %v311 = vmul.f32 %v305, %v310
    %v312 = vadd.f32 %v301, %v311
    %v313 = vld [vmem:[%s3 + $0x1b] sm:$0x1]
    %314 = vset.pattern.permute.xlu0 3
    %315 = vperm.xlu0 %314, %v279
    %v316 = vpop.permute.xlu0 %315
    %v318 = vlaneseq
    %v319 = vshrl.u32 %v318, 7
    %v320 = vsub.s32 0, %v319
    %v321 = vrot.slane %v313, %v320
    %v322 = vmul.f32 %v316, %v321
    %v323 = vadd.f32 %v312, %v322
    %v324 = vld [vmem:[%s3 + $0x1c] sm:$0x1]
    %325 = vset.pattern.permute.xlu0 4
    %326 = vperm.xlu0 %325, %v279
    %v327 = vpop.permute.xlu0 %326
    %v329 = vlaneseq
    %v330 = vshrl.u32 %v329, 7
    %v331 = vsub.s32 0, %v330
    %v332 = vrot.slane %v324, %v331
    %v333 = vmul.f32 %v327, %v332
    %v334 = vadd.f32 %v323, %v333
    %v335 = vld [vmem:[%s3 + $0x1d] sm:$0x1]
    %336 = vset.pattern.permute.xlu0 5
    %337 = vperm.xlu0 %336, %v279
    %v338 = vpop.permute.xlu0 %337
    %v340 = vlaneseq
    %v341 = vshrl.u32 %v340, 7
    %v342 = vsub.s32 0, %v341
    %v343 = vrot.slane %v335, %v342
    %v344 = vmul.f32 %v338, %v343
    %v345 = vadd.f32 %v334, %v344
    %v346 = vld [vmem:[%s3 + $0x1e] sm:$0x1]
    %347 = vset.pattern.permute.xlu0 6
    %348 = vperm.xlu0 %347, %v279
    %v349 = vpop.permute.xlu0 %348
    %v351 = vlaneseq
    %v352 = vshrl.u32 %v351, 7
    %v353 = vsub.s32 0, %v352
    %v354 = vrot.slane %v346, %v353
    %v355 = vmul.f32 %v349, %v354
    %v356 = vadd.f32 %v345, %v355
    %v357 = vld [vmem:[%s3 + $0x1f] sm:$0x1]
    %358 = vset.pattern.permute.xlu0 7
    %359 = vperm.xlu0 %358, %v279
    %v360 = vpop.permute.xlu0 %359
    %v362 = vlaneseq
    %v363 = vshrl.u32 %v362, 7
    %v364 = vsub.s32 0, %v363
    %v365 = vrot.slane %v357, %v364
    %v366 = vmul.f32 %v360, %v365
    %v367 = vadd.f32 %v356, %v366
    %v368 = vld [vmem:[%s3 + $0x20] sm:$0x1]
    %369 = vset.pattern.permute.xlu0 8
    %370 = vperm.xlu0 %369, %v279
    %v371 = vpop.permute.xlu0 %370
    %v373 = vlaneseq
    %v374 = vshrl.u32 %v373, 7
    %v375 = vsub.s32 0, %v374
    %v376 = vrot.slane %v368, %v375
    %v377 = vmul.f32 %v371, %v376
    %v378 = vadd.f32 %v367, %v377
    %v379 = vld [vmem:[%s3 + $0x21] sm:$0x1]
    %380 = vset.pattern.permute.xlu0 9
    %381 = vperm.xlu0 %380, %v279
    %v382 = vpop.permute.xlu0 %381
    %v384 = vlaneseq
    %v385 = vshrl.u32 %v384, 7
    %v386 = vsub.s32 0, %v385
    %v387 = vrot.slane %v379, %v386
    %v388 = vmul.f32 %v382, %v387
    %v389 = vadd.f32 %v378, %v388
    %v390 = vld [vmem:[%s3 + $0x22] sm:$0x1]
    %391 = vset.pattern.permute.xlu0 10
    %392 = vperm.xlu0 %391, %v279
    %v393 = vpop.permute.xlu0 %392
    %v395 = vlaneseq
    %v396 = vshrl.u32 %v395, 7
    %v397 = vsub.s32 0, %v396
    %v398 = vrot.slane %v390, %v397
    %v399 = vmul.f32 %v393, %v398
    %v400 = vadd.f32 %v389, %v399
    %v401 = vld [vmem:[%s3 + $0x23] sm:$0x1]
    %402 = vset.pattern.permute.xlu0 11
    %403 = vperm.xlu0 %402, %v279
    %v404 = vpop.permute.xlu0 %403
    %v406 = vlaneseq
    %v407 = vshrl.u32 %v406, 7
    %v408 = vsub.s32 0, %v407
    %v409 = vrot.slane %v401, %v408
    %v410 = vmul.f32 %v404, %v409
    %v411 = vadd.f32 %v400, %v410
    %v412 = vld [vmem:[%s3 + $0x24] sm:$0x1]
    %413 = vset.pattern.permute.xlu0 12
    %414 = vperm.xlu0 %413, %v279
    %v415 = vpop.permute.xlu0 %414
    %v417 = vlaneseq
    %v418 = vshrl.u32 %v417, 7
    %v419 = vsub.s32 0, %v418
    %v420 = vrot.slane %v412, %v419
    %v421 = vmul.f32 %v415, %v420
    %v422 = vadd.f32 %v411, %v421
    %v423 = vld [vmem:[%s3 + $0x25] sm:$0x1]
    %424 = vset.pattern.permute.xlu0 13
    %425 = vperm.xlu0 %424, %v279
    %v426 = vpop.permute.xlu0 %425
    %v428 = vlaneseq
    %v429 = vshrl.u32 %v428, 7
    %v430 = vsub.s32 0, %v429
    %v431 = vrot.slane %v423, %v430
    %v432 = vmul.f32 %v426, %v431
    %v433 = vadd.f32 %v422, %v432
    %v434 = vld [vmem:[%s3 + $0x26] sm:$0x1]
    %435 = vset.pattern.permute.xlu0 14
    %436 = vperm.xlu0 %435, %v279
    %v437 = vpop.permute.xlu0 %436
    %v439 = vlaneseq
    %v440 = vshrl.u32 %v439, 7
    %v441 = vsub.s32 0, %v440
    %v442 = vrot.slane %v434, %v441
    %v443 = vmul.f32 %v437, %v442
    %v444 = vadd.f32 %v433, %v443
    %v445 = vld [vmem:[%s3 + $0x27] sm:$0x1]
    %446 = vset.pattern.permute.xlu0 15
    %447 = vperm.xlu0 %446, %v279
    %v448 = vpop.permute.xlu0 %447
    %v450 = vlaneseq
    %v451 = vshrl.u32 %v450, 7
    %v452 = vsub.s32 0, %v451
    %v453 = vrot.slane %v445, %v452
    %v454 = vmul.f32 %v448, %v453
    %v455 = vadd.f32 %v444, %v454
    %v456 = vsub.f32 %v455, %v21
    %v457 = vand.u32 2147483647, %v456
    %vm458 = vcmp.lt.f32.partialorder %v457, 1.0
    %v459 = vmul.f32 %v456, 0.5
    %v460 = vmul.f32 %v459, %v456
    %v461 = vsub.f32 %v457, 0.5
    %v462 = vsel %vm458, %v460, %v461
    %v463 = vsel %vm236, %v462, 0.0
    %464 = vadd.xlane.f32.xlu0 %v463
    %v465 = vpop.xlane.xlu0 %464
    %v466 = vrot.slane %v465, 4
    %v467 = vadd.f32 %v465, %v466
    %v468 = vrot.slane %v467, 2
    %v469 = vadd.f32 %v467, %v468
    %v470 = vrot.slane %v469, 1
    %v471 = vadd.f32 %v469, %v470
    %s472 = vtos %v471
    %v473 = vrcp.pop 16.0
    %s474 = vtos %v473
    %s475 = smul.f32 %s472, %s474
    %v476 = vmul.f32 %v240, %v240
    %v477 = vmul.f32 %v476, %v476
    %v478 = vmul.f32 %v133, %v133
    %v479 = vadd.f32 %v477, %v478
    %v480 = vsub.f32 %v479, 1.0
    %v481 = vmul.f32 %v480, 0.5
    %v482 = vsub.f32 %v481, %v235
    %v483 = vsel %vm236, %v482, 0.0
    %484 = vadd.xlane.f32.xlu0 %v483
    %v485 = vpop.xlane.xlu0 %484
    %vm486 = vcmask 7168
    %v487 = vsel %vm486, %v485, 0.0
    %488 = vadd.xlane.f32.xlu0 %v487
    %v489 = vpop.xlane.xlu0 %488
    %v490 = vrot.slane %v489, 4
    %v491 = vadd.f32 %v489, %v490
    %v492 = vrot.slane %v491, 2
    %v493 = vadd.f32 %v491, %v492
    %v494 = vrot.slane %v493, 1
    %v495 = vadd.f32 %v493, %v494
    %s496 = vtos %v495
    %v497 = vrcp.pop 8.0
    %s498 = vtos %v497
    %s499 = smul.f32 %s496, %s498
    %v500 = vld [vmem:[%s3] sm:$0xff]
    %v501 = vld [vmem:[%s3 + $0x8] sm:$0xff]
    %v502 = vld [vmem:[%s3 + $0x10] sm:$0xff]
    %v503 = vld [vmem:[%s3 + $0x18] sm:$0xff]
    %v504 = vld [vmem:[%s3 + $0x20] sm:$0xff]
    %v505 = vmul.f32 %v500, %v500
    %v506 = vmul.f32 %v501, %v501
    %v507 = vmul.f32 %v502, %v502
    %v508 = vmul.f32 %v503, %v503
    %v509 = vmul.f32 %v504, %v504
    %vm510 = vcmask 130048
    %v511 = vsel %vm510, %v505, 0.0
    %512 = vadd.xlane.f32.xlu0 %v511
    %v513 = vpop.xlane.xlu0 %512
    %v514 = vsel %vm510, %v506, 0.0
    %515 = vadd.xlane.f32.xlu0 %v514
    %v516 = vpop.xlane.xlu0 %515
    %v517 = vsel %vm510, %v507, 0.0
    %518 = vadd.xlane.f32.xlu0 %v517
    %v519 = vpop.xlane.xlu0 %518
    %v520 = vsel %vm510, %v508, 0.0
    %521 = vadd.xlane.f32.xlu0 %v520
    %v522 = vpop.xlane.xlu0 %521
    %v523 = vsel %vm510, %v509, 0.0
    %524 = vadd.xlane.f32.xlu0 %v523
    %v525 = vpop.xlane.xlu0 %524
    %vm526 = vcmask 1024
    %v527 = vsel %vm526, %v513, 0.0
    %528 = vadd.xlane.f32.xlu0 %v527
    %v529 = vpop.xlane.xlu0 %528
    %v530 = vrot.slane %v529, 4
    %v531 = vadd.f32 %v529, %v530
    %v532 = vrot.slane %v531, 2
    %v533 = vadd.f32 %v531, %v532
    %v534 = vrot.slane %v533, 1
    %v535 = vadd.f32 %v533, %v534
    %s536 = vtos %v535
    %v537 = vstv %s536
    %v538 = vrsqrt.pop %v537
    %v539 = vmul.f32 %v537, %v538
    %vm540 = vcmp.eq.f32.partialorder %v537, inf
    %v541 = vsel %vm540, %v537, %v539
    %vm542 = vcmp.eq.f32.partialorder %v537, 0.0
    %v543 = vand.u32 %v537, 2147483648
    %v544 = vsel %vm542, %v543, %v541
    %s545 = vtos %v544
    %vm548 = vcmask 1045504
    %v549 = vrot.slane %v513, 2
    %v550 = vrot.slane %v516, 2
    %v551 = vsel %vm548, %v549, %v550
    %v553 = vsel %vm486, %v551, 0.0
    %554 = vadd.xlane.f32.xlu0 %v553
    %v555 = vpop.xlane.xlu0 %554
    %v556 = vrot.slane %v555, 4
    %v557 = vadd.f32 %v555, %v556
    %v558 = vrot.slane %v557, 2
    %v559 = vadd.f32 %v557, %v558
    %v560 = vrot.slane %v559, 1
    %v561 = vadd.f32 %v559, %v560
    %s562 = vtos %v561
    %v563 = vstv %s562
    %v564 = vrsqrt.pop %v563
    %v565 = vmul.f32 %v563, %v564
    %vm566 = vcmp.eq.f32.partialorder %v563, inf
    %v567 = vsel %vm566, %v563, %v565
    %vm568 = vcmp.eq.f32.partialorder %v563, 0.0
    %v569 = vand.u32 %v563, 2147483648
    %v570 = vsel %vm568, %v569, %v567
    %s571 = vtos %v570
    %s572 = sadd.f32 %s545, %s571
    %v574 = vsel %vm526, %v550, 0.0
    %575 = vadd.xlane.f32.xlu0 %v574
    %v576 = vpop.xlane.xlu0 %575
    %v577 = vrot.slane %v576, 4
    %v578 = vadd.f32 %v576, %v577
    %v579 = vrot.slane %v578, 2
    %v580 = vadd.f32 %v578, %v579
    %v581 = vrot.slane %v580, 1
    %v582 = vadd.f32 %v580, %v581
    %s583 = vtos %v582
    %v584 = vstv %s583
    %v585 = vrsqrt.pop %v584
    %v586 = vmul.f32 %v584, %v585
    %vm587 = vcmp.eq.f32.partialorder %v584, inf
    %v588 = vsel %vm587, %v584, %v586
    %vm589 = vcmp.eq.f32.partialorder %v584, 0.0
    %v590 = vand.u32 %v584, 2147483648
    %v591 = vsel %vm589, %v590, %v588
    %s592 = vtos %v591
    %s593 = sadd.f32 %s572, %s592
    %vm595 = vcmask 1043456
    %v596 = vrot.slane %v516, 4
    %v597 = vrot.slane %v519, 4
    %v598 = vsel %vm595, %v596, %v597
    %v600 = vsel %vm486, %v598, 0.0
    %601 = vadd.xlane.f32.xlu0 %v600
    %v602 = vpop.xlane.xlu0 %601
    %v603 = vrot.slane %v602, 4
    %v604 = vadd.f32 %v602, %v603
    %v605 = vrot.slane %v604, 2
    %v606 = vadd.f32 %v604, %v605
    %v607 = vrot.slane %v606, 1
    %v608 = vadd.f32 %v606, %v607
    %s609 = vtos %v608
    %v610 = vstv %s609
    %v611 = vrsqrt.pop %v610
    %v612 = vmul.f32 %v610, %v611
    %vm613 = vcmp.eq.f32.partialorder %v610, inf
    %v614 = vsel %vm613, %v610, %v612
    %vm615 = vcmp.eq.f32.partialorder %v610, 0.0
    %v616 = vand.u32 %v610, 2147483648
    %v617 = vsel %vm615, %v616, %v614
    %s618 = vtos %v617
    %s619 = sadd.f32 %s593, %s618
    %vm621 = vcmask 3072
    %v622 = vsel %vm621, %v597, 0.0
    %623 = vadd.xlane.f32.xlu0 %v622
    %v624 = vpop.xlane.xlu0 %623
    %v625 = vrot.slane %v624, 4
    %v626 = vadd.f32 %v624, %v625
    %v627 = vrot.slane %v626, 2
    %v628 = vadd.f32 %v626, %v627
    %v629 = vrot.slane %v628, 1
    %v630 = vadd.f32 %v628, %v629
    %s631 = vtos %v630
    %v632 = vstv %s631
    %v633 = vrsqrt.pop %v632
    %v634 = vmul.f32 %v632, %v633
    %vm635 = vcmp.eq.f32.partialorder %v632, inf
    %v636 = vsel %vm635, %v632, %v634
    %vm637 = vcmp.eq.f32.partialorder %v632, 0.0
    %v638 = vand.u32 %v632, 2147483648
    %v639 = vsel %vm637, %v638, %v636
    %s640 = vtos %v639
    %s641 = sadd.f32 %s619, %s640
    %v642 = vsel %vm486, %v522, 0.0
    %v643 = vsel %vm486, %v525, 0.0
    %v644 = vadd.f32 %v642, %v643
    %645 = vadd.xlane.f32.xlu0 %v644
    %v646 = vpop.xlane.xlu0 %645
    %v647 = vrot.slane %v646, 4
    %v648 = vadd.f32 %v646, %v647
    %v649 = vrot.slane %v648, 2
    %v650 = vadd.f32 %v648, %v649
    %v651 = vrot.slane %v650, 1
    %v652 = vadd.f32 %v650, %v651
    %s653 = vtos %v652
    %v654 = vstv %s653
    %v655 = vrsqrt.pop %v654
    %v656 = vmul.f32 %v654, %v655
    %vm657 = vcmp.eq.f32.partialorder %v654, inf
    %v658 = vsel %vm657, %v654, %v656
    %vm659 = vcmp.eq.f32.partialorder %v654, 0.0
    %v660 = vand.u32 %v654, 2147483648
    %v661 = vsel %vm659, %v660, %v658
    %s662 = vtos %v661
    %s663 = sadd.f32 %s641, %s662
    %s664 = smul.f32 %s499, 5e-05
    %s665 = sadd.f32 %s475, %s664
    %s666 = smul.f32 %s663, 5e-05
    %s667 = sadd.f32 %s665, %s666
    %v668 = vstv %s667
    %vm669 = vcmask 0
    %670 = vst.msk [vmem:[#allocation2] sm:$0x1] %vm669, %v668
    // Predicated region
    $region18: #{tpu_custom_call.1} parent=1 // pred_check
      _
    $region19: #{tpu_custom_call.1} parent=1 // pred_check_branch
      %672 = sbr.rel (0) target = $region21
    $region20: #{tpu_custom_call.1} parent=1 // pred_region
      %s674 = ssub.s32 16, 16
      %675 = vsyncadd [#allocation3], %s674
      %s677 = sshll.u32 [#allocation2], 4
      %s678 = int_to_ptr.vmem [resolvable:$true] %s677
      %680 = dma.vmem_to_hbm [thread:$0]  %s678, 16, %s4, [#allocation3]
    $region21: #{tpu_custom_call.1} parent=1 // pred_fallthru
      _
    // Predicated region
    $region22: #{tpu_custom_call.1} parent=1 // pred_check
      _
    $region23: #{tpu_custom_call.1} parent=1 // pred_check_branch
      %682 = sbr.rel (0) target = $region25
    $region24: #{tpu_custom_call.1} parent=1 // pred_region
      _
    $region25: #{tpu_custom_call.1} parent=1 // pred_fallthru
      _
    // Predicated region
    $region26: #{tpu_custom_call.1} parent=1 // pred_check
      _
    $region27: #{tpu_custom_call.1} parent=1 // pred_check_branch
      %684 = sbr.rel (0) target = $region29
    $region28: #{tpu_custom_call.1} parent=1 // pred_region
      %685 = dma.done [#allocation3], 16
    $region29: #{tpu_custom_call.1} parent=1 // pred_fallthru
      _
    // Predicated region
    $region30: #{tpu_custom_call.1} parent=1 // pred_check
      _
    $region31: #{tpu_custom_call.1} parent=1 // pred_check_branch
      %687 = sbr.rel (0) target = $region33
    $region32: #{tpu_custom_call.1} parent=1 // pred_region
      _
    $region33: #{tpu_custom_call.1} parent=1 // pred_fallthru
      _
    %688 = vsyncpa [#allocation3], 1

</llo_original>
